<compile_context>
chip_gen: v7x
topology: tpu7x:2x2x1
jax: 0.10.0
libtpu: 0.0.40
codegen_flags: <defaults>
</compile_context>

<pallas_src>
import numpy as np
import jax
import jax.numpy as jnp
from jax.experimental import pallas as pl
from jax.experimental.pallas import tpu as pltpu

_LANE = 128
_SUBLANE = 8

# Row layout of the packed per-feature vector array (f32, shape (8, Fmax)).
# Biases of the BN layers (b2, b3, b4) are not needed: BatchNorm over batch
# statistics is invariant to a per-feature constant shift.
_ROW_B1 = 0
_ROW_G2, _ROW_BE2 = 1, 2
_ROW_G3, _ROW_BE3 = 3, 4
_ROW_G4, _ROW_BE4 = 5, 6
_ROW_B5 = 7
_N_VEC_ROWS = 8  # sublane multiple


def _round_up(x, m):
    return ((x + m - 1) // m) * m


def _make_generator_kernel(b_real, b_pad, dims_pad, eps=0.8):
    """Build the fused MLP kernel; all shape constants are closed over."""
    p1, p2, p3, p4, p5 = dims_pad[1:]
    inv_n = 1.0 / float(b_real)
    n_extra = b_pad - b_real  # number of (identical) padded batch rows

    def kernel(z_ref, w1_ref, w2_ref, w3_hbm, w4_hbm, w5_hbm, vec_ref,
               out_ref, w3_v, w4_v, w5_v, dma_sem):
        # --- Prefetch the large weights from HBM; overlap with layers 1-2. ---
        cp3 = pltpu.make_async_copy(w3_hbm, w3_v, dma_sem.at[0])
        cp4 = pltpu.make_async_copy(w4_hbm, w4_v, dma_sem.at[1])
        cp5 = pltpu.make_async_copy(w5_hbm, w5_v, dma_sem.at[2])
        cp3.start()
        cp4.start()
        cp5.start()

        def vec(row, width):
            # (1, width) lane-aligned static slice of the packed vector array.
            return vec_ref[row:row + 1, :width]

        def lrelu_bf16(x):
            # LeakyReLU(0.2) as max(x, 0.2x); emit bf16 directly so the next
            # matmul's LHS is ready and the f32 copy is not live across it.
            return jnp.maximum(x, 0.2 * x).astype(jnp.bfloat16)

        def mm(a_bf16, w_bf16):
            # bf16 MXU operands, f32 accumulation.
            return jnp.dot(a_bf16, w_bf16, preferred_element_type=jnp.float32)

        def bn_stats(x):
            # Single-pass moments over the *real* batch rows.  Padded rows of
            # x are all identical (they descend from zero-padded z rows and
            # every layer applies the same per-row map), so a full-batch sum
            # minus a (1,F) pad-row correction equals the masked sum — no
            # (B,F) mask multiplies needed.
            s1 = jnp.sum(x, axis=0, keepdims=True)
            s2 = jnp.sum(x * x, axis=0, keepdims=True)
            if n_extra > 0:
                pad_row = x[b_real:b_real + 1, :]
                s1 = s1 - float(n_extra) * pad_row
                s2 = s2 - float(n_extra) * (pad_row * pad_row)
            mean = s1 * inv_n
            var = s2 * inv_n - mean * mean  # biased variance; eps=0.8 dominates
            return mean, var

        def bn_lrelu(x, g_row, be_row, width):
            # PyTorch BatchNorm1d(eps=0.8) training mode, folded to one
            # multiply-add over (B, F): scale = g * rsqrt(var+eps),
            # shift = beta - mean * scale.
            mean, var = bn_stats(x)
            scale = vec(g_row, width) * jax.lax.rsqrt(var + eps)
            shift = vec(be_row, width) - mean * scale
            return lrelu_bf16(x * scale + shift)

        # block(latent_dim, z_dim, normalize=False): Linear + LeakyReLU
        h = mm(z_ref[...], w1_ref[...]) + vec(_ROW_B1, p1)
        h = lrelu_bf16(h)

        # block(z_dim, 2*z_dim): Linear + BN + LeakyReLU  (bias folded into BN)
        h = bn_lrelu(mm(h, w2_ref[...]), _ROW_G2, _ROW_BE2, p2)

        # block(2*z_dim, 4*z_dim)
        cp3.wait()
        h = bn_lrelu(mm(h, w3_v[...]), _ROW_G3, _ROW_BE3, p3)

        # block(4*z_dim, 8*z_dim)
        cp4.wait()
        h = bn_lrelu(mm(h, w4_v[...]), _ROW_G4, _ROW_BE4, p4)

        # Linear(8*z_dim, prod(img_shape)) + Tanh  (lane-dense padded output)
        cp5.wait()
        out_ref[...] = jnp.tanh(mm(h, w5_v[...]) + vec(_ROW_B5, p5))

    return kernel


def init_params(key, latent_dim, z_dim, out_dim):
    """Raw f32 params, PyTorch-style init.  Weights stored as (in, out)."""
    dims = [(latent_dim, z_dim), (z_dim, 2 * z_dim), (2 * z_dim, 4 * z_dim),
            (4 * z_dim, 8 * z_dim), (8 * z_dim, out_dim)]
    keys = jax.random.split(key, 2 * len(dims))
    layers = []
    for li, (fin, fout) in enumerate(dims):
        bound = 1.0 / np.sqrt(fin)
        w = jax.random.uniform(keys[2 * li], (fin, fout), jnp.float32, -bound, bound)
        b = jax.random.uniform(keys[2 * li + 1], (fout,), jnp.float32, -bound, bound)
        if li in (1, 2, 3):  # layers followed by BatchNorm1d
            layers.append((w, b, jnp.ones((fout,), jnp.float32),
                           jnp.zeros((fout,), jnp.float32)))
        else:
            layers.append((w, b))
    return layers


def prepare_params(layers, latent_dim, z_dim, out_dim):
    """Pad feature dims to 128, cast weights to bf16, pack small vectors."""
    dims = (latent_dim, z_dim, 2 * z_dim, 4 * z_dim, 8 * z_dim, out_dim)
    dims_pad = tuple(_round_up(d, _LANE) for d in dims)

    ws = []
    for li in range(5):
        w = layers[li][0]
        fin, fout = w.shape
        wp = jnp.zeros((dims_pad[li], dims_pad[li + 1]), jnp.float32)
        wp = wp.at[:fin, :fout].set(w).astype(jnp.bfloat16)
        ws.append(wp)

    fmax = max(dims_pad[1:])
    vecs = jnp.zeros((_N_VEC_ROWS, fmax), jnp.float32)

    def put(arr, row, v):
        v = jnp.reshape(v, (-1,))
        return arr.at[row, :v.shape[0]].set(v)

    vecs = put(vecs, _ROW_B1, layers[0][1])
    vecs = put(vecs, _ROW_G2, layers[1][2])
    vecs = put(vecs, _ROW_BE2, layers[1][3])
    vecs = put(vecs, _ROW_G3, layers[2][2])
    vecs = put(vecs, _ROW_BE3, layers[2][3])
    vecs = put(vecs, _ROW_G4, layers[3][2])
    vecs = put(vecs, _ROW_BE4, layers[3][3])
    vecs = put(vecs, _ROW_B5, layers[4][1])
    return ws, vecs, dims_pad


def generator_forward(z, ws, vecs, dims_pad, img_shape):
    b, lat = z.shape
    out_dim = int(np.prod(img_shape))
    b_pad = max(_round_up(b, _SUBLANE), _SUBLANE)
    p0, p2, p3, p4, p5 = dims_pad[0], dims_pad[2], dims_pad[3], dims_pad[4], dims_pad[5]

    # Pad inputs: batch -> sublane multiple, features -> lane multiple.
    # z = z.float() then cast once to bf16 (MXU LHS dtype); padded rows are 0.
    z_pad = jnp.zeros((b_pad, p0), jnp.float32).at[:b, :lat].set(z.astype(jnp.float32))
    z_bf = z_pad.astype(jnp.bfloat16)

    kernel = _make_generator_kernel(b, b_pad, dims_pad)

    flops = 2 * b_pad * sum(dims_pad[i] * dims_pad[i + 1] for i in range(5))
    transcendentals = b_pad * p5 + 3 * max(dims_pad[1:])
    bytes_accessed = (z_bf.size * 2 + sum(int(w.size) * 2 for w in ws)
                      + vecs.size * 4 + b_pad * p5 * 4)

    # Explicit VMEM budget: resident inputs/output + HBM-weight scratch + a
    # few live f32 activation slabs, with headroom.  v5e's scoped default is
    # only 16 MiB; cap at v7x's 64 MiB physical VMEM.
    resident = (z_bf.size * 2 + int(ws[0].size) * 2 + int(ws[1].size) * 2
                + vecs.size * 4
                + (int(ws[2].size) + int(ws[3].size) + int(ws[4].size)) * 2
                + b_pad * p5 * 4)
    act = 4 * b_pad * max(dims_pad[1:]) * 4
    vmem_limit = int(min(64 << 20, max(8 << 20, int(1.25 * (resident + act)) + (2 << 20))))

    vmem = pl.BlockSpec(memory_space=pltpu.MemorySpace.VMEM)
    hbm = pl.BlockSpec(memory_space=pl.ANY)

    flat = pl.pallas_call(
        kernel,
        out_shape=jax.ShapeDtypeStruct((b_pad, p5), jnp.float32),
        in_specs=[vmem, vmem, vmem, hbm, hbm, hbm, vmem],
        out_specs=vmem,
        scratch_shapes=[pltpu.VMEM((p2, p3), jnp.bfloat16),
                        pltpu.VMEM((p3, p4), jnp.bfloat16),
                        pltpu.VMEM((p4, p5), jnp.bfloat16),
                        pltpu.SemaphoreType.DMA((3,))],
        compiler_params=pltpu.CompilerParams(vmem_limit_bytes=vmem_limit),
        cost_estimate=pl.CostEstimate(flops=flops,
                                      transcendentals=transcendentals,
                                      bytes_accessed=bytes_accessed),
    )(z_bf, ws[0], ws[1], ws[2], ws[3], ws[4], vecs)

    # img = img.view(img.size(0), *self.img_shape); drop padding.
    return flat[:b, :out_dim].reshape(b, *img_shape)
    # TODO(synk): for production sizes, add a batch-tiled grid ("parallel")
    # with a cross-core BN partial-sum exchange (VMEM_SHARED + core_barrier)
    # to use v7x's second TensorCore, and switch the output slab to bf16 for
    # large img_shape (e.g. 3x64x64) where f32 writeback dominates HBM traffic.


def generator_reference(z, layers, img_shape, eps=0.8):
    """Pure-JAX f32 reference matching the PyTorch module (training-mode BN)."""
    def lrelu(v):
        return jnp.maximum(v, 0.2 * v)

    h = z.astype(jnp.float32)
    w, b = layers[0]
    h = lrelu(h @ w + b)
    for li in (1, 2, 3):
        w, b, g, be = layers[li]
        h = h @ w + b
        mean = jnp.mean(h, axis=0, keepdims=True)
        var = jnp.mean((h - mean) ** 2, axis=0, keepdims=True)
        h = lrelu((h - mean) * jax.lax.rsqrt(var + eps) * g + be)
    w, b = layers[4]
    h = jnp.tanh(h @ w + b)
    return h.reshape(z.shape[0], *img_shape)


if __name__ == "__main__":
    # Small shapes consistent with the module; batch=6 exercises the
    # batch-padding + pad-row-corrected BatchNorm path (padded to 8 rows).
    batch = 6
    latent_dim = 32
    z_dim = 32
    img_shape = (1, 8, 8)          # (C, H, W) -> output (B, 1, 8, 8)
    out_dim = int(np.prod(img_shape))

    key = jax.random.PRNGKey(0)
    k_z, k_p = jax.random.split(key)
    z = jax.random.normal(k_z, (batch, latent_dim), dtype=jnp.float32)

    layers = init_params(k_p, latent_dim, z_dim, out_dim)
    ws, vecs, dims_pad = prepare_params(layers, latent_dim, z_dim, out_dim)

    img = generator_forward(z, ws, vecs, dims_pad, img_shape)
    img = jax.block_until_ready(img)

    assert img.shape == (batch,) + img_shape
    assert img.dtype == jnp.float32
    assert bool(jnp.all(jnp.isfinite(img)))
    assert bool(jnp.all(jnp.abs(img) <= 1.0))  # tanh output range

    ref = generator_reference(z, layers, img_shape)
    max_err = float(jnp.max(jnp.abs(img - ref)))
    assert max_err < 1e-1, f"mismatch vs f32 reference: {max_err}"

    print("KERNEL_OK")
</pallas_src>

<mosaic_0001>
module attributes {stable_mosaic.version = 11 : i64} {
  func.func @kernel(%arg0: memref<8x128xbf16, #tpu.memory_space<vmem>>, %arg1: memref<128x128xbf16, #tpu.memory_space<vmem>>, %arg2: memref<128x128xbf16, #tpu.memory_space<vmem>>, %arg3: memref<128x128xbf16, #tpu.memory_space<any>>, %arg4: memref<128x256xbf16, #tpu.memory_space<any>>, %arg5: memref<256x128xbf16, #tpu.memory_space<any>>, %arg6: memref<8x256xf32, #tpu.memory_space<vmem>>, %arg7: memref<8x128xf32, #tpu.memory_space<vmem>>, %arg8: memref<128x128xbf16, #tpu.memory_space<vmem>>, %arg9: memref<128x256xbf16, #tpu.memory_space<vmem>>, %arg10: memref<256x128xbf16, #tpu.memory_space<vmem>>, %arg11: memref<3x!tpu.dma_semaphore, #tpu.memory_space<semaphore_mem>>) attributes {dimension_semantics = [], scalar_prefetch = 0 : i64, scratch_operands = 4 : i64, tpu.core_type = #tpu.core_type<tc>} {
    %c0_i32 = arith.constant 0 : i32
    %0 = tpu.memref_slice %arg11[%c0_i32] : memref<3x!tpu.dma_semaphore, #tpu.memory_space<semaphore_mem>> -> memref<1x!tpu.dma_semaphore, #tpu.memory_space<semaphore_mem>>
    %1 = tpu.memref_squeeze %0 : memref<1x!tpu.dma_semaphore, #tpu.memory_space<semaphore_mem>> -> memref<!tpu.dma_semaphore, #tpu.memory_space<semaphore_mem>>
    tpu.enqueue_dma source(%arg3 : memref<128x128xbf16, #tpu.memory_space<any>>) target(%arg8 : memref<128x128xbf16, #tpu.memory_space<vmem>>) target_semaphore(%1 : memref<!tpu.dma_semaphore, #tpu.memory_space<semaphore_mem>>)
    %c1_i32 = arith.constant 1 : i32
    %2 = tpu.memref_slice %arg11[%c1_i32] : memref<3x!tpu.dma_semaphore, #tpu.memory_space<semaphore_mem>> -> memref<1x!tpu.dma_semaphore, #tpu.memory_space<semaphore_mem>>
    %3 = tpu.memref_squeeze %2 : memref<1x!tpu.dma_semaphore, #tpu.memory_space<semaphore_mem>> -> memref<!tpu.dma_semaphore, #tpu.memory_space<semaphore_mem>>
    tpu.enqueue_dma source(%arg4 : memref<128x256xbf16, #tpu.memory_space<any>>) target(%arg9 : memref<128x256xbf16, #tpu.memory_space<vmem>>) target_semaphore(%3 : memref<!tpu.dma_semaphore, #tpu.memory_space<semaphore_mem>>)
    %c2_i32 = arith.constant 2 : i32
    %4 = tpu.memref_slice %arg11[%c2_i32] : memref<3x!tpu.dma_semaphore, #tpu.memory_space<semaphore_mem>> -> memref<1x!tpu.dma_semaphore, #tpu.memory_space<semaphore_mem>>
    %5 = tpu.memref_squeeze %4 : memref<1x!tpu.dma_semaphore, #tpu.memory_space<semaphore_mem>> -> memref<!tpu.dma_semaphore, #tpu.memory_space<semaphore_mem>>
    tpu.enqueue_dma source(%arg5 : memref<256x128xbf16, #tpu.memory_space<any>>) target(%arg10 : memref<256x128xbf16, #tpu.memory_space<vmem>>) target_semaphore(%5 : memref<!tpu.dma_semaphore, #tpu.memory_space<semaphore_mem>>)
    %c0 = arith.constant 0 : index
    %c0_0 = arith.constant 0 : index
    %6 = vector.load %arg0[%c0, %c0_0] : memref<8x128xbf16, #tpu.memory_space<vmem>>, vector<8x128xbf16>
    %c0_1 = arith.constant 0 : index
    %c0_2 = arith.constant 0 : index
    %7 = vector.load %arg1[%c0_1, %c0_2] : memref<128x128xbf16, #tpu.memory_space<vmem>>, vector<128x128xbf16>
    %cst = arith.constant dense<0.000000e+00> : vector<8x128xf32>
    %8 = tpu.matmul %6, %7, %cst {dimension_numbers = #tpu.dot_dimension_numbers<[1], [0], [0], [1], [0, 0, 1, 1], [], []>} : vector<8x128xbf16>, vector<128x128xbf16>, vector<8x128xf32> -> vector<8x128xf32>
    %c0_3 = arith.constant 0 : index
    %c0_4 = arith.constant 0 : index
    %9 = vector.load %arg6[%c0_3, %c0_4] : memref<8x256xf32, #tpu.memory_space<vmem>>, vector<1x128xf32>
    %10 = vector.broadcast %9 : vector<1x128xf32> to vector<8x128xf32>
    %11 = arith.addf %8, %10 : vector<8x128xf32>
    %cst_5 = arith.constant 2.000000e-01 : f32
    %12 = vector.broadcast %cst_5 : f32 to vector<8x128xf32>
    %13 = arith.mulf %12, %11 : vector<8x128xf32>
    %14 = arith.maximumf %11, %13 : vector<8x128xf32>
    %15 = arith.truncf %14 : vector<8x128xf32> to vector<8x128xbf16>
    %c0_6 = arith.constant 0 : index
    %c0_7 = arith.constant 0 : index
    %16 = vector.load %arg2[%c0_6, %c0_7] : memref<128x128xbf16, #tpu.memory_space<vmem>>, vector<128x128xbf16>
    %cst_8 = arith.constant dense<0.000000e+00> : vector<8x128xf32>
    %17 = tpu.matmul %15, %16, %cst_8 {dimension_numbers = #tpu.dot_dimension_numbers<[1], [0], [0], [1], [0, 0, 1, 1], [], []>} : vector<8x128xbf16>, vector<128x128xbf16>, vector<8x128xf32> -> vector<8x128xf32>
    %cst_9 = arith.constant dense<0.000000e+00> : vector<128xf32>
    %18 = vector.multi_reduction <add>, %17, %cst_9 [0] : vector<8x128xf32> to vector<128xf32>
    %19 = vector.shape_cast %18 : vector<128xf32> to vector<1x128xf32>
    %20 = arith.mulf %17, %17 : vector<8x128xf32>
    %cst_10 = arith.constant dense<0.000000e+00> : vector<128xf32>
    %21 = vector.multi_reduction <add>, %20, %cst_10 [0] : vector<8x128xf32> to vector<128xf32>
    %22 = vector.shape_cast %21 : vector<128xf32> to vector<1x128xf32>
    %23 = vector.extract_strided_slice %17 {offsets = [6, 0], sizes = [1, 128], strides = [1, 1]} : vector<8x128xf32> to vector<1x128xf32>
    %cst_11 = arith.constant 2.000000e+00 : f32
    %24 = vector.broadcast %cst_11 : f32 to vector<1x128xf32>
    %25 = arith.mulf %24, %23 : vector<1x128xf32>
    %26 = arith.subf %19, %25 : vector<1x128xf32>
    %27 = arith.mulf %23, %23 : vector<1x128xf32>
    %cst_12 = arith.constant 2.000000e+00 : f32
    %28 = vector.broadcast %cst_12 : f32 to vector<1x128xf32>
    %29 = arith.mulf %28, %27 : vector<1x128xf32>
    %30 = arith.subf %22, %29 : vector<1x128xf32>
    %cst_13 = arith.constant 0.166666672 : f32
    %31 = vector.broadcast %cst_13 : f32 to vector<1x128xf32>
    %32 = arith.mulf %26, %31 : vector<1x128xf32>
    %cst_14 = arith.constant 0.166666672 : f32
    %33 = vector.broadcast %cst_14 : f32 to vector<1x128xf32>
    %34 = arith.mulf %30, %33 : vector<1x128xf32>
    %35 = arith.mulf %32, %32 : vector<1x128xf32>
    %36 = arith.subf %34, %35 : vector<1x128xf32>
    %c1 = arith.constant 1 : index
    %c0_15 = arith.constant 0 : index
    %37 = vector.load %arg6[%c1, %c0_15] : memref<8x256xf32, #tpu.memory_space<vmem>>, vector<1x128xf32>
    %cst_16 = arith.constant 8.000000e-01 : f32
    %38 = vector.broadcast %cst_16 : f32 to vector<1x128xf32>
    %39 = arith.addf %36, %38 : vector<1x128xf32>
    %40 = math.rsqrt %39 : vector<1x128xf32>
    %41 = arith.mulf %37, %40 : vector<1x128xf32>
    %c2 = arith.constant 2 : index
    %c0_17 = arith.constant 0 : index
    %42 = vector.load %arg6[%c2, %c0_17] : memref<8x256xf32, #tpu.memory_space<vmem>>, vector<1x128xf32>
    %43 = arith.mulf %32, %41 : vector<1x128xf32>
    %44 = arith.subf %42, %43 : vector<1x128xf32>
    %45 = vector.broadcast %41 : vector<1x128xf32> to vector<8x128xf32>
    %46 = arith.mulf %17, %45 : vector<8x128xf32>
    %47 = vector.broadcast %44 : vector<1x128xf32> to vector<8x128xf32>
    %48 = arith.addf %46, %47 : vector<8x128xf32>
    %cst_18 = arith.constant 2.000000e-01 : f32
    %49 = vector.broadcast %cst_18 : f32 to vector<8x128xf32>
    %50 = arith.mulf %49, %48 : vector<8x128xf32>
    %51 = arith.maximumf %48, %50 : vector<8x128xf32>
    %52 = arith.truncf %51 : vector<8x128xf32> to vector<8x128xbf16>
    %c0_i32_19 = arith.constant 0 : i32
    %53 = tpu.memref_slice %arg11[%c0_i32_19] : memref<3x!tpu.dma_semaphore, #tpu.memory_space<semaphore_mem>> -> memref<1x!tpu.dma_semaphore, #tpu.memory_space<semaphore_mem>>
    %54 = tpu.memref_squeeze %53 : memref<1x!tpu.dma_semaphore, #tpu.memory_space<semaphore_mem>> -> memref<!tpu.dma_semaphore, #tpu.memory_space<semaphore_mem>>
    tpu.wait_dma2 semaphore(%54 : memref<!tpu.dma_semaphore, #tpu.memory_space<semaphore_mem>>) src(%arg3 : memref<128x128xbf16, #tpu.memory_space<any>>) dst(%arg8 : memref<128x128xbf16, #tpu.memory_space<vmem>>)
    %c0_20 = arith.constant 0 : index
    %c0_21 = arith.constant 0 : index
    %55 = vector.load %arg8[%c0_20, %c0_21] : memref<128x128xbf16, #tpu.memory_space<vmem>>, vector<128x128xbf16>
    %cst_22 = arith.constant dense<0.000000e+00> : vector<8x128xf32>
    %56 = tpu.matmul %52, %55, %cst_22 {dimension_numbers = #tpu.dot_dimension_numbers<[1], [0], [0], [1], [0, 0, 1, 1], [], []>} : vector<8x128xbf16>, vector<128x128xbf16>, vector<8x128xf32> -> vector<8x128xf32>
    %cst_23 = arith.constant dense<0.000000e+00> : vector<128xf32>
    %57 = vector.multi_reduction <add>, %56, %cst_23 [0] : vector<8x128xf32> to vector<128xf32>
    %58 = vector.shape_cast %57 : vector<128xf32> to vector<1x128xf32>
    %59 = arith.mulf %56, %56 : vector<8x128xf32>
    %cst_24 = arith.constant dense<0.000000e+00> : vector<128xf32>
    %60 = vector.multi_reduction <add>, %59, %cst_24 [0] : vector<8x128xf32> to vector<128xf32>
    %61 = vector.shape_cast %60 : vector<128xf32> to vector<1x128xf32>
    %62 = vector.extract_strided_slice %56 {offsets = [6, 0], sizes = [1, 128], strides = [1, 1]} : vector<8x128xf32> to vector<1x128xf32>
    %cst_25 = arith.constant 2.000000e+00 : f32
    %63 = vector.broadcast %cst_25 : f32 to vector<1x128xf32>
    %64 = arith.mulf %63, %62 : vector<1x128xf32>
    %65 = arith.subf %58, %64 : vector<1x128xf32>
    %66 = arith.mulf %62, %62 : vector<1x128xf32>
    %cst_26 = arith.constant 2.000000e+00 : f32
    %67 = vector.broadcast %cst_26 : f32 to vector<1x128xf32>
    %68 = arith.mulf %67, %66 : vector<1x128xf32>
    %69 = arith.subf %61, %68 : vector<1x128xf32>
    %cst_27 = arith.constant 0.166666672 : f32
    %70 = vector.broadcast %cst_27 : f32 to vector<1x128xf32>
    %71 = arith.mulf %65, %70 : vector<1x128xf32>
    %cst_28 = arith.constant 0.166666672 : f32
    %72 = vector.broadcast %cst_28 : f32 to vector<1x128xf32>
    %73 = arith.mulf %69, %72 : vector<1x128xf32>
    %74 = arith.mulf %71, %71 : vector<1x128xf32>
    %75 = arith.subf %73, %74 : vector<1x128xf32>
    %c3 = arith.constant 3 : index
    %c0_29 = arith.constant 0 : index
    %76 = vector.load %arg6[%c3, %c0_29] : memref<8x256xf32, #tpu.memory_space<vmem>>, vector<1x128xf32>
    %cst_30 = arith.constant 8.000000e-01 : f32
    %77 = vector.broadcast %cst_30 : f32 to vector<1x128xf32>
    %78 = arith.addf %75, %77 : vector<1x128xf32>
    %79 = math.rsqrt %78 : vector<1x128xf32>
    %80 = arith.mulf %76, %79 : vector<1x128xf32>
    %c4 = arith.constant 4 : index
    %c0_31 = arith.constant 0 : index
    %81 = vector.load %arg6[%c4, %c0_31] : memref<8x256xf32, #tpu.memory_space<vmem>>, vector<1x128xf32>
    %82 = arith.mulf %71, %80 : vector<1x128xf32>
    %83 = arith.subf %81, %82 : vector<1x128xf32>
    %84 = vector.broadcast %80 : vector<1x128xf32> to vector<8x128xf32>
    %85 = arith.mulf %56, %84 : vector<8x128xf32>
    %86 = vector.broadcast %83 : vector<1x128xf32> to vector<8x128xf32>
    %87 = arith.addf %85, %86 : vector<8x128xf32>
    %cst_32 = arith.constant 2.000000e-01 : f32
    %88 = vector.broadcast %cst_32 : f32 to vector<8x128xf32>
    %89 = arith.mulf %88, %87 : vector<8x128xf32>
    %90 = arith.maximumf %87, %89 : vector<8x128xf32>
    %91 = arith.truncf %90 : vector<8x128xf32> to vector<8x128xbf16>
    %c1_i32_33 = arith.constant 1 : i32
    %92 = tpu.memref_slice %arg11[%c1_i32_33] : memref<3x!tpu.dma_semaphore, #tpu.memory_space<semaphore_mem>> -> memref<1x!tpu.dma_semaphore, #tpu.memory_space<semaphore_mem>>
    %93 = tpu.memref_squeeze %92 : memref<1x!tpu.dma_semaphore, #tpu.memory_space<semaphore_mem>> -> memref<!tpu.dma_semaphore, #tpu.memory_space<semaphore_mem>>
    tpu.wait_dma2 semaphore(%93 : memref<!tpu.dma_semaphore, #tpu.memory_space<semaphore_mem>>) src(%arg4 : memref<128x256xbf16, #tpu.memory_space<any>>) dst(%arg9 : memref<128x256xbf16, #tpu.memory_space<vmem>>)
    %c0_34 = arith.constant 0 : index
    %c0_35 = arith.constant 0 : index
    %94 = vector.load %arg9[%c0_34, %c0_35] : memref<128x256xbf16, #tpu.memory_space<vmem>>, vector<128x256xbf16>
    %cst_36 = arith.constant dense<0.000000e+00> : vector<8x256xf32>
    %95 = tpu.matmul %91, %94, %cst_36 {dimension_numbers = #tpu.dot_dimension_numbers<[1], [0], [0], [1], [0, 0, 1, 1], [], []>} : vector<8x128xbf16>, vector<128x256xbf16>, vector<8x256xf32> -> vector<8x256xf32>
    %cst_37 = arith.constant dense<0.000000e+00> : vector<256xf32>
    %96 = vector.multi_reduction <add>, %95, %cst_37 [0] : vector<8x256xf32> to vector<256xf32>
    %97 = vector.shape_cast %96 : vector<256xf32> to vector<1x256xf32>
    %98 = arith.mulf %95, %95 : vector<8x256xf32>
    %cst_38 = arith.constant dense<0.000000e+00> : vector<256xf32>
    %99 = vector.multi_reduction <add>, %98, %cst_38 [0] : vector<8x256xf32> to vector<256xf32>
    %100 = vector.shape_cast %99 : vector<256xf32> to vector<1x256xf32>
    %101 = vector.extract_strided_slice %95 {offsets = [6, 0], sizes = [1, 256], strides = [1, 1]} : vector<8x256xf32> to vector<1x256xf32>
    %cst_39 = arith.constant 2.000000e+00 : f32
    %102 = vector.broadcast %cst_39 : f32 to vector<1x256xf32>
    %103 = arith.mulf %102, %101 : vector<1x256xf32>
    %104 = arith.subf %97, %103 : vector<1x256xf32>
    %105 = arith.mulf %101, %101 : vector<1x256xf32>
    %cst_40 = arith.constant 2.000000e+00 : f32
    %106 = vector.broadcast %cst_40 : f32 to vector<1x256xf32>
    %107 = arith.mulf %106, %105 : vector<1x256xf32>
    %108 = arith.subf %100, %107 : vector<1x256xf32>
    %cst_41 = arith.constant 0.166666672 : f32
    %109 = vector.broadcast %cst_41 : f32 to vector<1x256xf32>
    %110 = arith.mulf %104, %109 : vector<1x256xf32>
    %cst_42 = arith.constant 0.166666672 : f32
    %111 = vector.broadcast %cst_42 : f32 to vector<1x256xf32>
    %112 = arith.mulf %108, %111 : vector<1x256xf32>
    %113 = arith.mulf %110, %110 : vector<1x256xf32>
    %114 = arith.subf %112, %113 : vector<1x256xf32>
    %c5 = arith.constant 5 : index
    %c0_43 = arith.constant 0 : index
    %115 = vector.load %arg6[%c5, %c0_43] : memref<8x256xf32, #tpu.memory_space<vmem>>, vector<1x256xf32>
    %cst_44 = arith.constant 8.000000e-01 : f32
    %116 = vector.broadcast %cst_44 : f32 to vector<1x256xf32>
    %117 = arith.addf %114, %116 : vector<1x256xf32>
    %118 = math.rsqrt %117 : vector<1x256xf32>
    %119 = arith.mulf %115, %118 : vector<1x256xf32>
    %c6 = arith.constant 6 : index
    %c0_45 = arith.constant 0 : index
    %120 = vector.load %arg6[%c6, %c0_45] : memref<8x256xf32, #tpu.memory_space<vmem>>, vector<1x256xf32>
    %121 = arith.mulf %110, %119 : vector<1x256xf32>
    %122 = arith.subf %120, %121 : vector<1x256xf32>
    %123 = vector.broadcast %119 : vector<1x256xf32> to vector<8x256xf32>
    %124 = arith.mulf %95, %123 : vector<8x256xf32>
    %125 = vector.broadcast %122 : vector<1x256xf32> to vector<8x256xf32>
    %126 = arith.addf %124, %125 : vector<8x256xf32>
    %cst_46 = arith.constant 2.000000e-01 : f32
    %127 = vector.broadcast %cst_46 : f32 to vector<8x256xf32>
    %128 = arith.mulf %127, %126 : vector<8x256xf32>
    %129 = arith.maximumf %126, %128 : vector<8x256xf32>
    %130 = arith.truncf %129 : vector<8x256xf32> to vector<8x256xbf16>
    %c2_i32_47 = arith.constant 2 : i32
    %131 = tpu.memref_slice %arg11[%c2_i32_47] : memref<3x!tpu.dma_semaphore, #tpu.memory_space<semaphore_mem>> -> memref<1x!tpu.dma_semaphore, #tpu.memory_space<semaphore_mem>>
    %132 = tpu.memref_squeeze %131 : memref<1x!tpu.dma_semaphore, #tpu.memory_space<semaphore_mem>> -> memref<!tpu.dma_semaphore, #tpu.memory_space<semaphore_mem>>
    tpu.wait_dma2 semaphore(%132 : memref<!tpu.dma_semaphore, #tpu.memory_space<semaphore_mem>>) src(%arg5 : memref<256x128xbf16, #tpu.memory_space<any>>) dst(%arg10 : memref<256x128xbf16, #tpu.memory_space<vmem>>)
    %c0_48 = arith.constant 0 : index
    %c0_49 = arith.constant 0 : index
    %133 = vector.load %arg10[%c0_48, %c0_49] : memref<256x128xbf16, #tpu.memory_space<vmem>>, vector<256x128xbf16>
    %cst_50 = arith.constant dense<0.000000e+00> : vector<8x128xf32>
    %134 = tpu.matmul %130, %133, %cst_50 {dimension_numbers = #tpu.dot_dimension_numbers<[1], [0], [0], [1], [0, 0, 1, 1], [], []>} : vector<8x256xbf16>, vector<256x128xbf16>, vector<8x128xf32> -> vector<8x128xf32>
    %c7 = arith.constant 7 : index
    %c0_51 = arith.constant 0 : index
    %135 = vector.load %arg6[%c7, %c0_51] : memref<8x256xf32, #tpu.memory_space<vmem>>, vector<1x128xf32>
    %136 = vector.broadcast %135 : vector<1x128xf32> to vector<8x128xf32>
    %137 = arith.addf %134, %136 : vector<8x128xf32>
    %138 = math.tanh %137 : vector<8x128xf32>
    %c0_52 = arith.constant 0 : index
    %c0_53 = arith.constant 0 : index
    %139 = vector.load %arg7[%c0_52, %c0_53] : memref<8x128xf32, #tpu.memory_space<vmem>>, vector<8x128xf32>
    tpu.vector_store %arg7[%c0_52, %c0_53], %138 {strides = array<i32>} : memref<8x128xf32, #tpu.memory_space<vmem>>, vector<8x128xf32>,
    return
  }
}

</mosaic_0001>

<llo_original>
// kernel: tpu_custom_call.1
$region0: #{tpu_custom_call.1}
  #allocation0 [shape = 'u32[]', space=smem, size = 0x4, offset = 0x4, fixed_abs, tag = 'smem constant byte address 0x4 - core index']
  #allocation1 [shape = 'u32[144,128]{1,0:T(1,128)}', space=vmem, size = 0x12000, scoped, tag = 'internal scratch']
  #allocation2 [shape = 'bf16[128,128]{1,0:T(16,128)(2,1)}', space=vmem, size = 0x8000, scoped, tag = 'scratch operand']
  #allocation3 [shape = 'bf16[128,256]{1,0:T(16,128)(2,1)}', space=vmem, size = 0x10000, scoped, tag = 'scratch operand']
  #allocation4 [shape = 'bf16[256,128]{1,0:T(16,128)(2,1)}', space=vmem, size = 0x10000, scoped, tag = 'scratch operand']
  #allocation5 [shape = 's32[3]{0}', space=sflag, size = 0xc, scoped, tag = 'scratch operand']
  #allocation13 [shape = 's32[]', space=sflag, size = 0x4, offset = 0, fixed_abs, tag = 'sflag constant byte address 0x0 - dummy sync flag']
  #allocation14 [shape = 's32[]', space=sflag, size = 0x4, offset = 0, fixed_abs, tag = 'sflag constant byte address 0x0 - dummy sync flag']
  #allocation15 [shape = 'u32[]', space=smem, size = 0x4, offset = 0x44, fixed_abs, tag = 'smem constant byte address 0x44 - assertion arg 0']
  #allocation16 [shape = 'u32[]', space=smem, size = 0x4, offset = 0x48, fixed_abs, tag = 'smem constant byte address 0x48 - assertion arg 1']
  #allocation17 [shape = 's32[]', space=sflag, size = 0x4, offset = 0, fixed_abs, tag = 'sflag constant byte address 0x0 - dummy sync flag']
  #allocation19 [shape = 's32[]', space=sflag, size = 0x4, offset = 0, fixed_abs, tag = 'sflag constant byte address 0x0 - dummy sync flag']
  #allocation20 [shape = 's32[]', space=sflag, size = 0x4, offset = 0, fixed_abs, tag = 'sflag constant byte address 0x0 - dummy sync flag']
  %s0 = inlined_call_operand.hbm [shape: bf16[8,128], index: 0, kind: input, shape index: {}]
  %s1 = inlined_call_operand.hbm [shape: bf16[128,128], index: 1, kind: input, shape index: {}]
  %s2 = inlined_call_operand.hbm [shape: bf16[128,128], index: 2, kind: input, shape index: {}]
  %s3 = inlined_call_operand.hbm [shape: bf16[128,128], index: 3, kind: input, shape index: {}]
  %s4 = inlined_call_operand.hbm [shape: bf16[128,256], index: 4, kind: input, shape index: {}]
  %s5 = inlined_call_operand.hbm [shape: bf16[256,128], index: 5, kind: input, shape index: {}]
  %s6 = inlined_call_operand.vmem [shape: f32[8,256], index: 6, kind: input, shape index: {}]
  %s7 = inlined_call_operand.hbm [shape: f32[8,128], index: 7, kind: output, shape index: {}]
  %s8 = sld [smem:[#allocation0]]
  $region46: #{tpu_custom_call.1} parent=0
    _
  %s10 = ssub.s32 1, %s8
  %s11 = scalar_select 0, %s10, %s8
  $region1: #{tpu_custom_call.1} parent=0
    #allocation6 [shape = 'u8[2048]{0}', space=vmem, size = 0x800, scoped, tag = 'input window, operand 0, single buffered']
    #allocation7 [shape = 's32[1]{0}', space=sflag, size = 0x4, scoped, tag = 'scoped memory for tpu_custom_call.1']
    #allocation8 [shape = 's32[1]{0}', space=sflag, size = 0x4, scoped, tag = 'scoped memory for tpu_custom_call.1']
    #allocation9 [shape = 'u8[32768]{0}', space=vmem, size = 0x8000, scoped, tag = 'input window, operand 1, single buffered']
    #allocation10 [shape = 's32[1]{0}', space=sflag, size = 0x4, scoped, tag = 'scoped memory for tpu_custom_call.1']
    #allocation11 [shape = 'u8[32768]{0}', space=vmem, size = 0x8000, scoped, tag = 'input window, operand 2, single buffered']
    #allocation12 [shape = 'u8[4096]{0}', space=vmem, size = 0x1000, scoped, tag = 'output window, operand 0, single buffered']
    #allocation18 [shape = 'u32[9]{0}', space=smem, size = 0x24, scoped, tag = 'DMA stride descriptor']
    %12 = vsyncpa [#allocation7], 0
    %13 = vsyncpa [#allocation10], 0
    %14 = vsyncpa [#allocation8], 0
    // Predicated region
    $region2: #{tpu_custom_call.1} parent=1 // pred_check
      _
    $region3: #{tpu_custom_call.1} parent=1 // pred_check_branch
      %16 = sbr.rel (0) target = $region5
    $region4: #{tpu_custom_call.1} parent=1 // pred_region
      %s18 = ssub.s32 64, 64
      %19 = vsyncadd [#allocation7], %s18
      %s21 = sshll.u32 [#allocation6], 4
      %s22 = int_to_ptr.vmem [resolvable:$true] %s21
      %24 = dma.hbm_to_vmem [thread:$0]  %s0, 64, %s22, [#allocation7]
    $region5: #{tpu_custom_call.1} parent=1 // pred_fallthru
      _
    // Predicated region
    $region6: #{tpu_custom_call.1} parent=1 // pred_check
      _
    $region7: #{tpu_custom_call.1} parent=1 // pred_check_branch
      %26 = sbr.rel (0) target = $region9
    $region8: #{tpu_custom_call.1} parent=1 // pred_region
      %s28 = ssub.s32 1024, 1024
      %29 = vsyncadd [#allocation10], %s28
      %s30 = sshll.u32 [#allocation9], 4
      %s31 = int_to_ptr.vmem [resolvable:$true] %s30
      %36 = dma.hbm_to_vmem [thread:$0]  %s1, 1024, %s31, [#allocation10], 64, 64, 4
    $region9: #{tpu_custom_call.1} parent=1 // pred_fallthru
      _
    // Predicated region
    $region10: #{tpu_custom_call.1} parent=1 // pred_check
      _
    $region11: #{tpu_custom_call.1} parent=1 // pred_check_branch
      %38 = sbr.rel (0) target = $region13
    $region12: #{tpu_custom_call.1} parent=1 // pred_region
      %s40 = ssub.s32 1024, 1024
      %41 = vsyncadd [#allocation10], %s40
      %s42 = sshll.u32 [#allocation11], 4
      %s43 = int_to_ptr.vmem [resolvable:$true] %s42
      %48 = dma.hbm_to_vmem [thread:$0]  %s2, 1024, %s43, [#allocation10], 64, 64, 4
    $region13: #{tpu_custom_call.1} parent=1 // pred_fallthru
      _
    // Predicated region
    $region14: #{tpu_custom_call.1} parent=1 // pred_check
      _
    $region15: #{tpu_custom_call.1} parent=1 // pred_check_branch
      %50 = sbr.rel (0) target = $region17
    $region16: #{tpu_custom_call.1} parent=1 // pred_region
      _
    $region17: #{tpu_custom_call.1} parent=1 // pred_fallthru
      _
    // Predicated region
    $region18: #{tpu_custom_call.1} parent=1 // pred_check
      _
    $region19: #{tpu_custom_call.1} parent=1 // pred_check_branch
      %52 = sbr.rel (0) target = $region21
    $region20: #{tpu_custom_call.1} parent=1 // pred_region
      %53 = dma.done [#allocation7], 64
    $region21: #{tpu_custom_call.1} parent=1 // pred_fallthru
      _
    // Predicated region
    $region22: #{tpu_custom_call.1} parent=1 // pred_check
      _
    $region23: #{tpu_custom_call.1} parent=1 // pred_check_branch
      %55 = sbr.rel (0) target = $region25
    $region24: #{tpu_custom_call.1} parent=1 // pred_region
      %56 = dma.done [#allocation10], 1024
    $region25: #{tpu_custom_call.1} parent=1 // pred_fallthru
      _
    // Predicated region
    $region26: #{tpu_custom_call.1} parent=1 // pred_check
      _
    $region27: #{tpu_custom_call.1} parent=1 // pred_check_branch
      %58 = sbr.rel (0) target = $region29
    $region28: #{tpu_custom_call.1} parent=1 // pred_region
      %59 = dma.done [#allocation10], 1024
    $region29: #{tpu_custom_call.1} parent=1 // pred_fallthru
      _
    // Predicated region
    $region30: #{tpu_custom_call.1} parent=1 // pred_check
      _
    $region31: #{tpu_custom_call.1} parent=1 // pred_check_branch
      %62 = sbr.rel target = $region33
    $region32: #{tpu_custom_call.1} parent=1 // pred_region
      %63 = sst [smem:[#allocation15]] [#allocation14]
      %64 = sst [smem:[#allocation16]] [#allocation13]
    $region33: #{tpu_custom_call.1} parent=1 // pred_fallthru
      _
    %66 = shalt.err (0)
    %s68 = sshll.u32 [#allocation2], 4
    %s69 = int_to_ptr.vmem [resolvable:$true] %s68
    %71 = dma.hbm_to_vmem [thread:$0]  %s3, 1024, %s69, [#allocation5]
    %s72 = scalar_lea.sflag [#allocation5], 1
    %s74 = sshll.u32 1, 14
    %s75 = sxor.u32 4294967295, %s74
    %s77 = sld [smem:[#allocation0]]
    %s78 = sadd.s32 2, %s77
    %s80 = sshll.u32 7, 26
    %s81 = sxor.u32 4294967295, %s80
    %s82 = sand.u32 0, %s81
    %s83 = sshll.u32 %s78, 26
    %s84 = sor.u32 %s82, %s83
    %s85 = sshll.u32 [#allocation3], 4
    %s86 = int_to_ptr.vmem [resolvable:$true] %s85
    %89 = sst [smem:[#allocation18]] 256
    %s90 = scalar_lea.smem [#allocation18], 1
    %91 = sst [smem:[%s90]] 256
    %s92 = scalar_lea.smem [#allocation18], 2
    %93 = sst [smem:[%s92]] 2
    %s94 = scalar_lea.smem [#allocation18], 3
    %95 = sst [smem:[%s94]] 64
    %s96 = scalar_lea.smem [#allocation18], 4
    %97 = sst [smem:[%s96]] 128
    %s98 = scalar_lea.smem [#allocation18], 5
    %99 = sst [smem:[%s98]] 2
    %s100 = scalar_lea.smem [#allocation18], 6
    %101 = sst [smem:[%s100]] 128
    %s102 = scalar_lea.smem [#allocation18], 7
    %103 = sst [smem:[%s102]] 64
    %s104 = scalar_lea.smem [#allocation18], 8
    %105 = sst [smem:[%s104]] 4
    %107 = dma.general %s4, 2048, %s86, %s72, [#allocation17], [#allocation18], %s84, 0
    %s108 = scalar_lea.sflag [#allocation5], 2
    // Predicated region
    $region34: #{tpu_custom_call.1} parent=1 // pred_check
      _
    $region35: #{tpu_custom_call.1} parent=1 // pred_check_branch
      %110 = sbr.rel target = $region37
    $region36: #{tpu_custom_call.1} parent=1 // pred_region
      %111 = sst [smem:[#allocation15]] [#allocation20]
      %112 = sst [smem:[#allocation16]] [#allocation19]
    $region37: #{tpu_custom_call.1} parent=1 // pred_fallthru
      _
    %114 = shalt.err (0)
    %s116 = sshll.u32 [#allocation4], 4
    %s117 = int_to_ptr.vmem [resolvable:$true] %s116
    %119 = dma.hbm_to_vmem [thread:$0]  %s5, 2048, %s117, %s108
    %v120 = vld [vmem:[#allocation6] sm:$0xf]
    %v121 = vld [vmem:[#allocation9] sm:$0xf]
    %v122 = vld [vmem:[#allocation9 + $0x4] sm:$0xf]
    %v123 = vld [vmem:[#allocation9 + $0x8] sm:$0xf]
    %v124 = vld [vmem:[#allocation9 + $0xc] sm:$0xf]
    %v125 = vld [vmem:[#allocation9 + $0x10] sm:$0xf]
    %v126 = vld [vmem:[#allocation9 + $0x14] sm:$0xf]
    %v127 = vld [vmem:[#allocation9 + $0x18] sm:$0xf]
    %v128 = vld [vmem:[#allocation9 + $0x1c] sm:$0xf]
    %v129 = vld [vmem:[#allocation9 + $0x20] sm:$0xf]
    %v130 = vld [vmem:[#allocation9 + $0x24] sm:$0xf]
    %v131 = vld [vmem:[#allocation9 + $0x28] sm:$0xf]
    %v132 = vld [vmem:[#allocation9 + $0x2c] sm:$0xf]
    %v133 = vld [vmem:[#allocation9 + $0x30] sm:$0xf]
    %v134 = vld [vmem:[#allocation9 + $0x34] sm:$0xf]
    %v135 = vld [vmem:[#allocation9 + $0x38] sm:$0xf]
    %v136 = vld [vmem:[#allocation9 + $0x3c] sm:$0xf]
    %v137 = vld [vmem:[%s6] ss:$0 sm:$0xff]
    %v154 = vunpack.c.l.b16 %v121
    %v155 = vunpack.c.l.b16 %v122
    %v156 = vunpack.c.l.b16 %v123
    %v157 = vunpack.c.l.b16 %v124
    %v158 = vunpack.c.l.b16 %v125
    %v159 = vunpack.c.l.b16 %v126
    %v160 = vunpack.c.l.b16 %v127
    %v161 = vunpack.c.l.b16 %v128
    %v162 = vunpack.c.l.b16 %v129
    %v163 = vunpack.c.l.b16 %v130
    %v164 = vunpack.c.l.b16 %v131
    %v165 = vunpack.c.l.b16 %v132
    %v166 = vunpack.c.l.b16 %v133
    %v167 = vunpack.c.l.b16 %v134
    %v168 = vunpack.c.l.b16 %v135
    %v169 = vunpack.c.l.b16 %v136
    %v170 = vpack.c.b16 %v155, %v154
    %v171 = vpack.c.b16 %v157, %v156
    %v172 = vpack.c.b16 %v159, %v158
    %v173 = vpack.c.b16 %v161, %v160
    %v174 = vpack.c.b16 %v163, %v162
    %v175 = vpack.c.b16 %v165, %v164
    %v176 = vpack.c.b16 %v167, %v166
    %v177 = vpack.c.b16 %v169, %v168
    %186 = vmatprep.subr.bf16.mxu0 0
    %187 = vmatpush1.bf16.msra.mxu0 %v170
    %188 = vmatprep.subr.bf16.mxu0 0
    %189 = vmatpush1.bf16.msra.mxu0 %v171
    %190 = vmatprep.subr.bf16.mxu0 0
    %191 = vmatpush1.bf16.msra.mxu0 %v172
    %192 = vmatprep.subr.bf16.mxu0 0
    %193 = vmatpush1.bf16.msra.mxu0 %v173
    %194 = vmatprep.subr.bf16.mxu0 0
    %195 = vmatpush1.bf16.msra.mxu0 %v174
    %196 = vmatprep.subr.bf16.mxu0 0
    %197 = vmatpush1.bf16.msra.mxu0 %v175
    %198 = vmatprep.subr.bf16.mxu0 0
    %199 = vmatpush1.bf16.msra.mxu0 %v176
    %200 = vmatprep.subr.bf16.mxu0 0
    %201 = vmatpush1.bf16.msra.mxu0 %v177
    %202 = vmatprep.subr.bf16.mxu0 0
    %203 = vmatpush1.bf16.msra.mxu0 0
    %204 = vmatprep.subr.bf16.mxu0 0
    %205 = vmatpush1.bf16.msra.mxu0 0
    %206 = vmatprep.subr.bf16.mxu0 0
    %207 = vmatpush1.bf16.msra.mxu0 0
    %208 = vmatprep.subr.bf16.mxu0 0
    %209 = vmatpush1.bf16.msra.mxu0 0
    %210 = vmatprep.subr.bf16.mxu0 0
    %211 = vmatpush1.bf16.msra.mxu0 0
    %212 = vmatprep.subr.bf16.mxu0 0
    %213 = vmatpush1.bf16.msra.mxu0 0
    %214 = vmatprep.subr.bf16.mxu0 0
    %215 = vmatpush1.bf16.msra.mxu0 0
    %216 = vmatprep.subr.bf16.mxu0 0
    %217 = vmatpush1.bf16.msra.mxu0 0
    %218 = vmatprep.mubr.bf16.mxu0 0
    %219 = vmatmul.mubr.bf16.gmra.mrb[0].mxu0 %v120
    %v220 = vpop.f32.mrb[0].mxu0
    %v221 = vadd.f32 %v137, %v220
    %v222 = vpop.f32.mrb[0].mxu0
    %v223 = vpop.f32.mrb[0].mxu0
    %v224 = vpop.f32.mrb[0].mxu0
    %225 = vdwg.mxu0
    %v226 = vmul.f32 %v221, 0.2
    %v227 = vmax.f32 %v221, %v226
    %v228 = vpack.c.bf16 %v227, %v227
    %v229 = vld [vmem:[#allocation11] sm:$0xf]
    %v230 = vld [vmem:[#allocation11 + $0x4] sm:$0xf]
    %v231 = vld [vmem:[#allocation11 + $0x8] sm:$0xf]
    %v232 = vld [vmem:[#allocation11 + $0xc] sm:$0xf]
    %v233 = vld [vmem:[#allocation11 + $0x10] sm:$0xf]
    %v234 = vld [vmem:[#allocation11 + $0x14] sm:$0xf]
    %v235 = vld [vmem:[#allocation11 + $0x18] sm:$0xf]
    %v236 = vld [vmem:[#allocation11 + $0x1c] sm:$0xf]
    %v237 = vld [vmem:[#allocation11 + $0x20] sm:$0xf]
    %v238 = vld [vmem:[#allocation11 + $0x24] sm:$0xf]
    %v239 = vld [vmem:[#allocation11 + $0x28] sm:$0xf]
    %v240 = vld [vmem:[#allocation11 + $0x2c] sm:$0xf]
    %v241 = vld [vmem:[#allocation11 + $0x30] sm:$0xf]
    %v242 = vld [vmem:[#allocation11 + $0x34] sm:$0xf]
    %v243 = vld [vmem:[#allocation11 + $0x38] sm:$0xf]
    %v244 = vld [vmem:[#allocation11 + $0x3c] sm:$0xf]
    %v261 = vunpack.c.l.b16 %v229
    %v262 = vunpack.c.l.b16 %v230
    %v263 = vunpack.c.l.b16 %v231
    %v264 = vunpack.c.l.b16 %v232
    %v265 = vunpack.c.l.b16 %v233
    %v266 = vunpack.c.l.b16 %v234
    %v267 = vunpack.c.l.b16 %v235
    %v268 = vunpack.c.l.b16 %v236
    %v269 = vunpack.c.l.b16 %v237
    %v270 = vunpack.c.l.b16 %v238
    %v271 = vunpack.c.l.b16 %v239
    %v272 = vunpack.c.l.b16 %v240
    %v273 = vunpack.c.l.b16 %v241
    %v274 = vunpack.c.l.b16 %v242
    %v275 = vunpack.c.l.b16 %v243
    %v276 = vunpack.c.l.b16 %v244
    %v277 = vpack.c.b16 %v262, %v261
    %v278 = vpack.c.b16 %v264, %v263
    %v279 = vpack.c.b16 %v266, %v265
    %v280 = vpack.c.b16 %v268, %v267
    %v281 = vpack.c.b16 %v270, %v269
    %v282 = vpack.c.b16 %v272, %v271
    %v283 = vpack.c.b16 %v274, %v273
    %v284 = vpack.c.b16 %v276, %v275
    %293 = vmatprep.subr.bf16.mxu0 0
    %294 = vmatpush1.bf16.msra.mxu0 %v277
    %295 = vmatprep.subr.bf16.mxu0 0
    %296 = vmatpush1.bf16.msra.mxu0 %v278
    %297 = vmatprep.subr.bf16.mxu0 0
    %298 = vmatpush1.bf16.msra.mxu0 %v279
    %299 = vmatprep.subr.bf16.mxu0 0
    %300 = vmatpush1.bf16.msra.mxu0 %v280
    %301 = vmatprep.subr.bf16.mxu0 0
    %302 = vmatpush1.bf16.msra.mxu0 %v281
    %303 = vmatprep.subr.bf16.mxu0 0
    %304 = vmatpush1.bf16.msra.mxu0 %v282
    %305 = vmatprep.subr.bf16.mxu0 0
    %306 = vmatpush1.bf16.msra.mxu0 %v283
    %307 = vmatprep.subr.bf16.mxu0 0
    %308 = vmatpush1.bf16.msra.mxu0 %v284
    %309 = vmatprep.subr.bf16.mxu0 0
    %310 = vmatpush1.bf16.msra.mxu0 0
    %311 = vmatprep.subr.bf16.mxu0 0
    %312 = vmatpush1.bf16.msra.mxu0 0
    %313 = vmatprep.subr.bf16.mxu0 0
    %314 = vmatpush1.bf16.msra.mxu0 0
    %315 = vmatprep.subr.bf16.mxu0 0
    %316 = vmatpush1.bf16.msra.mxu0 0
    %317 = vmatprep.subr.bf16.mxu0 0
    %318 = vmatpush1.bf16.msra.mxu0 0
    %319 = vmatprep.subr.bf16.mxu0 0
    %320 = vmatpush1.bf16.msra.mxu0 0
    %321 = vmatprep.subr.bf16.mxu0 0
    %322 = vmatpush1.bf16.msra.mxu0 0
    %323 = vmatprep.subr.bf16.mxu0 0
    %324 = vmatpush1.bf16.msra.mxu0 0
    %325 = vmatprep.mubr.bf16.mxu0 0
    %326 = vmatmul.mubr.bf16.gmra.mrb[0].mxu0 %v228
    %v327 = vpop.f32.mrb[0].mxu0
    %v328 = vadd.f32 0.0, %v327
    %v329 = vpop.f32.mrb[0].mxu0
    %v330 = vpop.f32.mrb[0].mxu0
    %v331 = vpop.f32.mrb[0].mxu0
    %332 = vdwg.mxu0
    %v333 = vrot.slane %v328, 4
    %v334 = vadd.f32 %v328, %v333
    %v335 = vrot.slane %v334, 2
    %v336 = vadd.f32 %v334, %v335
    %v337 = vrot.slane %v336, 1
    %v338 = vadd.f32 %v336, %v337
    %v339 = vmul.f32 %v328, %v328
    %v340 = vrot.slane %v339, 4
    %v341 = vadd.f32 %v339, %v340
    %v342 = vrot.slane %v341, 2
    %v343 = vadd.f32 %v341, %v342
    %v344 = vrot.slane %v343, 1
    %v345 = vadd.f32 %v343, %v344
    %v346 = vmul.f32 %v328, 2.0
    %v347 = vsub.f32 %v338, %v346
    %v348 = vmul.f32 %v339, 2.0
    %v349 = vsub.f32 %v345, %v348
    %v350 = vmul.f32 %v347, 0.16666667
    %v351 = vmul.f32 %v349, 0.16666667
    %v352 = vmul.f32 %v350, %v350
    %v353 = vsub.f32 %v351, %v352
    %v354 = vld [vmem:[%s6 + $0x1] ss:$0 sm:$0xff]
    %v355 = vadd.f32 %v353, 0.8
    %v356 = vrsqrt.pop %v355
    %v357 = vmul.f32 %v354, %v356
    %v358 = vld [vmem:[%s6 + $0x2] ss:$0 sm:$0xff]
    %v359 = vmul.f32 %v350, %v357
    %v360 = vsub.f32 %v358, %v359
    %v361 = vlaneseq
    %v362 = vshrl.u32 %v361, 7
    %v363 = vsub.s32 6, %v362
    %v364 = vrot.slane %v357, %v363
    %v365 = vmul.f32 %v328, %v364
    %v366 = vlaneseq
    %v367 = vshrl.u32 %v366, 7
    %v368 = vsub.s32 6, %v367
    %v369 = vrot.slane %v360, %v368
    %v370 = vadd.f32 %v365, %v369
    %v371 = vmul.f32 %v370, 0.2
    %v372 = vmax.f32 %v370, %v371
    %v373 = vpack.c.bf16 %v372, %v372
    %s374 = smul.u32 4, 16
    %s375 = smul.u32 %s374, 1
    %s376 = sshll.u32 %s375, 4
    %377 = dma.done [#allocation5], %s376
    %v378 = vld [vmem:[#allocation2] sm:$0xff]
    %v379 = vld [vmem:[#allocation2 + $0x8] sm:$0xff]
    %v380 = vld [vmem:[#allocation2 + $0x10] sm:$0xff]
    %v381 = vld [vmem:[#allocation2 + $0x18] sm:$0xff]
    %v382 = vld [vmem:[#allocation2 + $0x20] sm:$0xff]
    %v383 = vld [vmem:[#allocation2 + $0x28] sm:$0xff]
    %v384 = vld [vmem:[#allocation2 + $0x30] sm:$0xff]
    %v385 = vld [vmem:[#allocation2 + $0x38] sm:$0xff]
    %386 = vmatprep.subr.bf16.mxu0 0
    %387 = vmatpush1.bf16.msra.mxu0 %v378
    %388 = vmatprep.subr.bf16.mxu0 0
    %389 = vmatpush1.bf16.msra.mxu0 %v379
    %390 = vmatprep.subr.bf16.mxu0 0
    %391 = vmatpush1.bf16.msra.mxu0 %v380
    %392 = vmatprep.subr.bf16.mxu0 0
    %393 = vmatpush1.bf16.msra.mxu0 %v381
    %394 = vmatprep.subr.bf16.mxu0 0
    %395 = vmatpush1.bf16.msra.mxu0 %v382
    %396 = vmatprep.subr.bf16.mxu0 0
    %397 = vmatpush1.bf16.msra.mxu0 %v383
    %398 = vmatprep.subr.bf16.mxu0 0
    %399 = vmatpush1.bf16.msra.mxu0 %v384
    %400 = vmatprep.subr.bf16.mxu0 0
    %401 = vmatpush1.bf16.msra.mxu0 %v385
    %402 = vmatprep.subr.bf16.mxu0 0
    %403 = vmatpush1.bf16.msra.mxu0 0
    %404 = vmatprep.subr.bf16.mxu0 0
    %405 = vmatpush1.bf16.msra.mxu0 0
    %406 = vmatprep.subr.bf16.mxu0 0
    %407 = vmatpush1.bf16.msra.mxu0 0
    %408 = vmatprep.subr.bf16.mxu0 0
    %409 = vmatpush1.bf16.msra.mxu0 0
    %410 = vmatprep.subr.bf16.mxu0 0
    %411 = vmatpush1.bf16.msra.mxu0 0
    %412 = vmatprep.subr.bf16.mxu0 0
    %413 = vmatpush1.bf16.msra.mxu0 0
    %414 = vmatprep.subr.bf16.mxu0 0
    %415 = vmatpush1.bf16.msra.mxu0 0
    %416 = vmatprep.subr.bf16.mxu0 0
    %417 = vmatpush1.bf16.msra.mxu0 0
    %418 = vmatprep.mubr.bf16.mxu0 0
    %419 = vmatmul.mubr.bf16.gmra.mrb[0].mxu0 %v373
    %v420 = vpop.f32.mrb[0].mxu0
    %v421 = vadd.f32 0.0, %v420
    %v422 = vpop.f32.mrb[0].mxu0
    %v423 = vpop.f32.mrb[0].mxu0
    %v424 = vpop.f32.mrb[0].mxu0
    %425 = vdwg.mxu0
    %v426 = vrot.slane %v421, 4
    %v427 = vadd.f32 %v421, %v426
    %v428 = vrot.slane %v427, 2
    %v429 = vadd.f32 %v427, %v428
    %v430 = vrot.slane %v429, 1
    %v431 = vadd.f32 %v429, %v430
    %v432 = vmul.f32 %v421, %v421
    %v433 = vrot.slane %v432, 4
    %v434 = vadd.f32 %v432, %v433
    %v435 = vrot.slane %v434, 2
    %v436 = vadd.f32 %v434, %v435
    %v437 = vrot.slane %v436, 1
    %v438 = vadd.f32 %v436, %v437
    %v439 = vmul.f32 %v421, 2.0
    %v440 = vsub.f32 %v431, %v439
    %v441 = vmul.f32 %v432, 2.0
    %v442 = vsub.f32 %v438, %v441
    %v443 = vmul.f32 %v440, 0.16666667
    %v444 = vmul.f32 %v442, 0.16666667
    %v445 = vmul.f32 %v443, %v443
    %v446 = vsub.f32 %v444, %v445
    %v447 = vld [vmem:[%s6 + $0x3] ss:$0 sm:$0xff]
    %v448 = vadd.f32 %v446, 0.8
    %v449 = vrsqrt.pop %v448
    %v450 = vmul.f32 %v447, %v449
    %v451 = vld [vmem:[%s6 + $0x4] ss:$0 sm:$0xff]
    %v452 = vmul.f32 %v443, %v450
    %v453 = vsub.f32 %v451, %v452
    %v454 = vlaneseq
    %v455 = vshrl.u32 %v454, 7
    %v456 = vsub.s32 6, %v455
    %v457 = vrot.slane %v450, %v456
    %v458 = vmul.f32 %v421, %v457
    %v459 = vlaneseq
    %v460 = vshrl.u32 %v459, 7
    %v461 = vsub.s32 6, %v460
    %v462 = vrot.slane %v453, %v461
    %v463 = vadd.f32 %v458, %v462
    %v464 = vmul.f32 %v463, 0.2
    %v465 = vmax.f32 %v463, %v464
    %v466 = vpack.c.bf16 %v465, %v465
    %s467 = smul.u32 %s374, 2
    %s468 = sshll.u32 %s467, 4
    %469 = dma.done %s72, %s468
    %v470 = vld [vmem:[#allocation3] sm:$0xff]
    %v471 = vld [vmem:[#allocation3 + $0x8] sm:$0xff]
    %v472 = vld [vmem:[#allocation3 + $0x10] sm:$0xff]
    %v473 = vld [vmem:[#allocation3 + $0x18] sm:$0xff]
    %v474 = vld [vmem:[#allocation3 + $0x20] sm:$0xff]
    %v475 = vld [vmem:[#allocation3 + $0x28] sm:$0xff]
    %v476 = vld [vmem:[#allocation3 + $0x30] sm:$0xff]
    %v477 = vld [vmem:[#allocation3 + $0x38] sm:$0xff]
    %v478 = vld [vmem:[#allocation3 + $0x40] sm:$0xff]
    %v479 = vld [vmem:[#allocation3 + $0x48] sm:$0xff]
    %v480 = vld [vmem:[#allocation3 + $0x50] sm:$0xff]
    %v481 = vld [vmem:[#allocation3 + $0x58] sm:$0xff]
    %v482 = vld [vmem:[#allocation3 + $0x60] sm:$0xff]
    %v483 = vld [vmem:[#allocation3 + $0x68] sm:$0xff]
    %v484 = vld [vmem:[#allocation3 + $0x70] sm:$0xff]
    %v485 = vld [vmem:[#allocation3 + $0x78] sm:$0xff]
    %486 = vmatprep.subr.bf16.mxu0 %v471
    %487 = vmatpush1.bf16.msra.mxu0 %v470
    %488 = vmatprep.subr.bf16.mxu0 %v473
    %489 = vmatpush1.bf16.msra.mxu0 %v472
    %490 = vmatprep.subr.bf16.mxu0 %v475
    %491 = vmatpush1.bf16.msra.mxu0 %v474
    %492 = vmatprep.subr.bf16.mxu0 %v477
    %493 = vmatpush1.bf16.msra.mxu0 %v476
    %494 = vmatprep.subr.bf16.mxu0 %v479
    %495 = vmatpush1.bf16.msra.mxu0 %v478
    %496 = vmatprep.subr.bf16.mxu0 %v481
    %497 = vmatpush1.bf16.msra.mxu0 %v480
    %498 = vmatprep.subr.bf16.mxu0 %v483
    %499 = vmatpush1.bf16.msra.mxu0 %v482
    %500 = vmatprep.subr.bf16.mxu0 %v485
    %501 = vmatpush1.bf16.msra.mxu0 %v484
    %502 = vmatprep.subr.bf16.mxu0 0
    %503 = vmatpush1.bf16.msra.mxu0 0
    %504 = vmatprep.subr.bf16.mxu0 0
    %505 = vmatpush1.bf16.msra.mxu0 0
    %506 = vmatprep.subr.bf16.mxu0 0
    %507 = vmatpush1.bf16.msra.mxu0 0
    %508 = vmatprep.subr.bf16.mxu0 0
    %509 = vmatpush1.bf16.msra.mxu0 0
    %510 = vmatprep.subr.bf16.mxu0 0
    %511 = vmatpush1.bf16.msra.mxu0 0
    %512 = vmatprep.subr.bf16.mxu0 0
    %513 = vmatpush1.bf16.msra.mxu0 0
    %514 = vmatprep.subr.bf16.mxu0 0
    %515 = vmatpush1.bf16.msra.mxu0 0
    %516 = vmatprep.subr.bf16.mxu0 0
    %517 = vmatpush1.bf16.msra.mxu0 0
    %518 = vmatprep.mubr.bf16.mxu0 0
    %519 = vmatmul.mubr.bf16.gmra.mrb[0].mxu0 %v466
    %v520 = vpop.f32.mrb[0].mxu0
    %v521 = vadd.f32 0.0, %v520
    %v522 = vpop.f32.mrb[0].mxu0
    %v523 = vadd.f32 0.0, %v522
    %v524 = vpop.f32.mrb[0].mxu0
    %v525 = vpop.f32.mrb[0].mxu0
    %526 = vdwg.mxu0
    %v527 = vrot.slane %v521, 4
    %v528 = vadd.f32 %v521, %v527
    %v529 = vrot.slane %v528, 2
    %v530 = vadd.f32 %v528, %v529
    %v531 = vrot.slane %v530, 1
    %v532 = vadd.f32 %v530, %v531
    %v533 = vrot.slane %v523, 4
    %v534 = vadd.f32 %v523, %v533
    %v535 = vrot.slane %v534, 2
    %v536 = vadd.f32 %v534, %v535
    %v537 = vrot.slane %v536, 1
    %v538 = vadd.f32 %v536, %v537
    %v539 = vmul.f32 %v521, %v521
    %v540 = vmul.f32 %v523, %v523
    %v541 = vrot.slane %v539, 4
    %v542 = vadd.f32 %v539, %v541
    %v543 = vrot.slane %v542, 2
    %v544 = vadd.f32 %v542, %v543
    %v545 = vrot.slane %v544, 1
    %v546 = vadd.f32 %v544, %v545
    %v547 = vrot.slane %v540, 4
    %v548 = vadd.f32 %v540, %v547
    %v549 = vrot.slane %v548, 2
    %v550 = vadd.f32 %v548, %v549
    %v551 = vrot.slane %v550, 1
    %v552 = vadd.f32 %v550, %v551
    %v553 = vmul.f32 %v521, 2.0
    %v554 = vmul.f32 %v523, 2.0
    %v555 = vsub.f32 %v532, %v553
    %v556 = vsub.f32 %v538, %v554
    %v557 = vmul.f32 %v539, 2.0
    %v558 = vmul.f32 %v540, 2.0
    %v559 = vsub.f32 %v546, %v557
    %v560 = vsub.f32 %v552, %v558
    %v561 = vmul.f32 %v555, 0.16666667
    %v562 = vmul.f32 %v556, 0.16666667
    %v563 = vmul.f32 %v559, 0.16666667
    %v564 = vmul.f32 %v560, 0.16666667
    %v565 = vmul.f32 %v561, %v561
    %v566 = vmul.f32 %v562, %v562
    %v567 = vsub.f32 %v563, %v565
    %v568 = vsub.f32 %v564, %v566
    %s569 = scalar_lea.vmem %s6, 5
    %v570 = vld [vmem:[%s569] ss:$8 sm:$0x3]
    %v571 = vadd.f32 %v567, 0.8
    %v572 = vadd.f32 %v568, 0.8
    %v573 = vrsqrt.pop %v571
    %v574 = vrsqrt.pop %v572
    %v577 = vcombine.high %v573, %v574
    %v579 = vunpack.c.l.s4 1966171168
    %v580 = vunpack.c.0.s8 %v579
    %v581 = vlaneseq
    %v582 = vshrl.u32 %v581, 7
    %v583 = vsub.s32 %v580, %v582
    %v584 = vrot.slane %v577, %v583
    %v586 = vunpack.c.l.s4 1966171168
    %v587 = vunpack.c.0.s8 %v586
    %v588 = vlaneseq
    %v589 = vshrl.u32 %v588, 7
    %v590 = vsub.s32 %v587, %v589
    %v591 = vrot.slane %v584, %v590
    %v592 = vcombine.high %v591, %v591
    %v594 = vmul.f32 %v570, %v592
    %s595 = scalar_lea.vmem %s6, 6
    %v596 = vld [vmem:[%s595] ss:$8 sm:$0x3]
    %v598 = vlaneseq
    %v599 = vshrl.u32 %v598, 7
    %v600 = vsub.s32 0, %v599
    %v601 = vrot.slane %v594, %v600
    %v602 = vlaneseq
    %v603 = vshrl.u32 %v602, 7
    %v604 = vsub.s32 1, %v603
    %v605 = vrot.slane %v594, %v604
    %v608 = vmul.f32 %v561, %v601
    %v609 = vmul.f32 %v562, %v605
    %v612 = vcombine.high %v608, %v609
    %v614 = vunpack.c.l.s4 1966171168
    %v615 = vunpack.c.0.s8 %v614
    %v616 = vlaneseq
    %v617 = vshrl.u32 %v616, 7
    %v618 = vsub.s32 %v615, %v617
    %v619 = vrot.slane %v612, %v618
    %v621 = vunpack.c.l.s4 1966171168
    %v622 = vunpack.c.0.s8 %v621
    %v623 = vlaneseq
    %v624 = vshrl.u32 %v623, 7
    %v625 = vsub.s32 %v622, %v624
    %v626 = vrot.slane %v619, %v625
    %v627 = vcombine.high %v626, %v626
    %v629 = vsub.f32 %v596, %v627
    %v630 = vmul.f32 %v521, %v601
    %v631 = vmul.f32 %v523, %v605
    %v633 = vlaneseq
    %v634 = vshrl.u32 %v633, 7
    %v635 = vsub.s32 0, %v634
    %v636 = vrot.slane %v629, %v635
    %v637 = vlaneseq
    %v638 = vshrl.u32 %v637, 7
    %v639 = vsub.s32 1, %v638
    %v640 = vrot.slane %v629, %v639
    %v643 = vadd.f32 %v630, %v636
    %v644 = vadd.f32 %v631, %v640
    %v645 = vmul.f32 %v643, 0.2
    %v646 = vmul.f32 %v644, 0.2
    %v647 = vmax.f32 %v643, %v645
    %v648 = vmax.f32 %v644, %v646
    %v649 = vpack.c.bf16 %v647, %v647
    %v650 = vpack.c.bf16 %v648, %v648
    %s651 = smul.u32 4, 32
    %s652 = smul.u32 %s651, 1
    %s653 = sshll.u32 %s652, 4
    %654 = dma.done %s108, %s653
    %v655 = vld [vmem:[#allocation4] sm:$0xff]
    %v656 = vld [vmem:[#allocation4 + $0x8] sm:$0xff]
    %v657 = vld [vmem:[#allocation4 + $0x10] sm:$0xff]
    %v658 = vld [vmem:[#allocation4 + $0x18] sm:$0xff]
    %v659 = vld [vmem:[#allocation4 + $0x20] sm:$0xff]
    %v660 = vld [vmem:[#allocation4 + $0x28] sm:$0xff]
    %v661 = vld [vmem:[#allocation4 + $0x30] sm:$0xff]
    %v662 = vld [vmem:[#allocation4 + $0x38] sm:$0xff]
    %v663 = vld [vmem:[#allocation4 + $0x40] sm:$0xff]
    %v664 = vld [vmem:[#allocation4 + $0x48] sm:$0xff]
    %v665 = vld [vmem:[#allocation4 + $0x50] sm:$0xff]
    %v666 = vld [vmem:[#allocation4 + $0x58] sm:$0xff]
    %v667 = vld [vmem:[#allocation4 + $0x60] sm:$0xff]
    %v668 = vld [vmem:[#allocation4 + $0x68] sm:$0xff]
    %v669 = vld [vmem:[#allocation4 + $0x70] sm:$0xff]
    %v670 = vld [vmem:[#allocation4 + $0x78] sm:$0xff]
    %v671 = vld [vmem:[%s6 + $0x7] ss:$0 sm:$0xff]
    %672 = vmatprep.subr.bf16.mxu0 0
    %673 = vmatpush1.bf16.msra.mxu0 %v655
    %674 = vmatprep.subr.bf16.mxu0 0
    %675 = vmatpush1.bf16.msra.mxu0 %v656
    %676 = vmatprep.subr.bf16.mxu0 0
    %677 = vmatpush1.bf16.msra.mxu0 %v657
    %678 = vmatprep.subr.bf16.mxu0 0
    %679 = vmatpush1.bf16.msra.mxu0 %v658
    %680 = vmatprep.subr.bf16.mxu0 0
    %681 = vmatpush1.bf16.msra.mxu0 %v659
    %682 = vmatprep.subr.bf16.mxu0 0
    %683 = vmatpush1.bf16.msra.mxu0 %v660
    %684 = vmatprep.subr.bf16.mxu0 0
    %685 = vmatpush1.bf16.msra.mxu0 %v661
    %686 = vmatprep.subr.bf16.mxu0 0
    %687 = vmatpush1.bf16.msra.mxu0 %v662
    %688 = vmatprep.subr.bf16.mxu0 0
    %689 = vmatpush1.bf16.msra.mxu0 %v663
    %690 = vmatprep.subr.bf16.mxu0 0
    %691 = vmatpush1.bf16.msra.mxu0 %v664
    %692 = vmatprep.subr.bf16.mxu0 0
    %693 = vmatpush1.bf16.msra.mxu0 %v665
    %694 = vmatprep.subr.bf16.mxu0 0
    %695 = vmatpush1.bf16.msra.mxu0 %v666
    %696 = vmatprep.subr.bf16.mxu0 0
    %697 = vmatpush1.bf16.msra.mxu0 %v667
    %698 = vmatprep.subr.bf16.mxu0 0
    %699 = vmatpush1.bf16.msra.mxu0 %v668
    %700 = vmatprep.subr.bf16.mxu0 0
    %701 = vmatpush1.bf16.msra.mxu0 %v669
    %702 = vmatprep.subr.bf16.mxu0 0
    %703 = vmatpush1.bf16.msra.mxu0 %v670
    %704 = vmatprep.mubr.bf16.mxu0 %v650
    %705 = vmatmul.mubr.bf16.gmra.mrb[0].mxu0 %v649
    %v706 = vpop.f32.mrb[0].mxu0
    %v707 = vadd.f32 %v671, %v706
    %v708 = vpop.f32.mrb[0].mxu0
    %v709 = vpop.f32.mrb[0].mxu0
    %v710 = vpop.f32.mrb[0].mxu0
    %711 = vdwg.mxu0
    %v712 = vtanh.pop %v707
    %713 = vst [vmem:[#allocation12] sm:$0xff] %v712
    // Predicated region
    $region38: #{tpu_custom_call.1} parent=1 // pred_check
      _
    $region39: #{tpu_custom_call.1} parent=1 // pred_check_branch
      %715 = sbr.rel (0) target = $region41
    $region40: #{tpu_custom_call.1} parent=1 // pred_region
      %s717 = ssub.s32 128, 128
      %718 = vsyncadd [#allocation8], %s717
      %s720 = sshll.u32 [#allocation12], 4
      %s721 = int_to_ptr.vmem [resolvable:$true] %s720
      %723 = dma.vmem_to_hbm [thread:$0]  %s721, 128, %s7, [#allocation8]
    $region41: #{tpu_custom_call.1} parent=1 // pred_fallthru
      _
    // Predicated region
    $region42: #{tpu_custom_call.1} parent=1 // pred_check
      _
    $region43: #{tpu_custom_call.1} parent=1 // pred_check_branch
      %725 = sbr.rel (0) target = $region45
    $region44: #{tpu_custom_call.1} parent=1 // pred_region
      %726 = dma.done [#allocation8], 128
    $region45: #{tpu_custom_call.1} parent=1 // pred_fallthru
      _
    %727 = vsyncpa [#allocation7], 1
    %728 = vsyncpa [#allocation10], 1
    %729 = vsyncpa [#allocation8], 1
  %730 = vsyncmov [#allocation5]
  %s731 = vpop.sfrf %730
  %p732 = scmp.eq.s32.totalorder %s731, 0
  %p733 = pneg %p732
  %735 = shalt.err (%p733)
  %s736 = scalar_lea.sflag [#allocation5], 1
  %737 = vsyncmov %s736
  %s738 = vpop.sfrf %737
  %p739 = scmp.eq.s32.totalorder %s738, 0
  %p740 = pneg %p739
  %742 = shalt.err (%p740)
  %s743 = scalar_lea.sflag [#allocation5], 2
  %744 = vsyncmov %s743
  %s745 = vpop.sfrf %744
  %p746 = scmp.eq.s32.totalorder %s745, 0
  %p747 = pneg %p746
  %749 = shalt.err (%p747)

</llo_original>
